<compile_context>
chip_gen: v5e
topology: v5e:2x2
jax: 0.10.0
libtpu: 0.0.40
codegen_flags: <defaults>
</compile_context>

<pallas_src>
import jax
import jax.numpy as jnp
from jax.experimental import pallas as pl
from jax.experimental.pallas import tpu as pltpu

_MiB = 1024 * 1024


def _tpu_vmem_capacity_bytes() -> int:
    """Physical per-core VMEM; conservative fallback = 64 MiB (v7x per-TC)."""
    try:
        return int(pltpu.get_tpu_info().vmem_capacity_bytes)
    except Exception:
        return 64 * _MiB


def _broadcast_batch_kernel(q_ref, o_ref):
    # q_ref: (1, BN, D)  parameter slice.  Its index_map depends only on the
    #        outer N-block axis, so it is DMA'd once per N-block, not per step.
    # o_ref: (TB, BN, D) TB consecutive batch rows of the output.
    o_ref[...] = jnp.broadcast_to(q_ref[...], o_ref.shape)


def dream_embedding_forward(dream_queries: jax.Array,
                            batch_size: int,
                            *,
                            block_batch: int | None = None,
                            block_n: int | None = None) -> jax.Array:
    """Replicates `dream_queries.repeat(batch_size, 1, 1)` via a Pallas kernel.

    dream_queries: (1, N, D)
    returns:       (batch_size, N, D), same dtype
    """
    if dream_queries.ndim != 3 or dream_queries.shape[0] != 1:
        raise ValueError(f"expected (1, N, D) parameter, got {dream_queries.shape}")
    batch_size = int(batch_size)
    assert batch_size >= 1
    _, n, d = dream_queries.shape
    dtype = dream_queries.dtype
    itemsize = jnp.dtype(dtype).itemsize
    # Native sublane packing: f32 -> 8 rows/vreg, bf16 -> 16, int8/fp8 -> 32.
    sublane = max(8, 32 // itemsize)
    row_bytes = n * d * itemsize                       # one (1, N, D) batch row

    # --- per-generation VMEM budget & target block size ---------------------
    vmem_cap = _tpu_vmem_capacity_bytes()              # 128 MiB v5e/v6e, 64 MiB v7x
    headroom = 2 * _MiB                                # compiler scratch, sems, ...
    budget = min(vmem_cap // 2, 48 * _MiB)             # working-set ceiling
    # Bigger blocks on 128-MiB parts (amortize ~0.35us/step pipeline overhead),
    # smaller on v7x where VMEM is 64 MiB and per-step overhead is cheaper.
    desired_block = 16 * _MiB if vmem_cap >= 96 * _MiB else 8 * _MiB
    # 2x double-buffered output block + param block(s) + headroom must fit.
    target_block_bytes = max(_MiB, min(desired_block, (budget - headroom) // 3))

    # --- N tiling (only when a single batch row is too big for one block) ---
    if block_n is None:
        if row_bytes <= target_block_bytes or n % sublane != 0 or n <= sublane:
            block_n = n
        else:
            per_nrow = d * itemsize
            block_n = (target_block_bytes // per_nrow) // sublane * sublane
            block_n = int(min(max(block_n, sublane), n))
    else:
        block_n = int(min(max(1, block_n), n))
        if block_n < n:  # partial N blocks must keep the sublane-aligned shape
            block_n = int(min(max((block_n // sublane) * sublane, sublane), n))
    slab_row_bytes = block_n * d * itemsize            # one (1, block_n, D) slice

    # --- parameter spec: request a single buffer (constant per N-block) -----
    def _param_index_map(nn, b):
        return (0, nn, 0)

    try:
        param_spec = pl.BlockSpec((1, block_n, d), _param_index_map,
                                  pipeline_mode=pl.Buffered(1))
    except (TypeError, AttributeError):
        param_spec = pl.BlockSpec((1, block_n, d), _param_index_map)
    # Conservative VMEM accounting: provision for 2 param buffers even though
    # we requested 1, in case pipeline_mode is ignored by this backend.
    param_bufs_acct = 2

    # --- batch tiling --------------------------------------------------------
    # Largest block_batch whose double-buffered output block (+ param) fits.
    max_fit = max(1, (budget - headroom - param_bufs_acct * slab_row_bytes)
                  // (2 * slab_row_bytes))
    if block_batch is None:
        block_batch = max(1, target_block_bytes // slab_row_bytes)
        if batch_size > 1:
            # Keep >= 2 grid steps: lets both v7x TensorCores write and gives
            # the pipeline something to overlap.
            block_batch = min(block_batch, pl.cdiv(batch_size, 2))
    block_batch = int(max(1, min(int(block_batch), batch_size, max_fit)))

    # --- VMEM limit: provision exactly what we use (never clamp below need) --
    out_block_bytes = block_batch * slab_row_bytes
    need = 2 * out_block_bytes + param_bufs_acct * slab_row_bytes + headroom
    vmem_limit = int(max(need, 16 * _MiB))

    grid = (pl.cdiv(n, block_n), pl.cdiv(batch_size, block_batch))
    out_shape = jax.ShapeDtypeStruct((batch_size, n, d), dtype)
    bytes_accessed = (batch_size * n * d + n * d) * itemsize

    return pl.pallas_call(
        _broadcast_batch_kernel,
        out_shape=out_shape,
        grid_spec=pltpu.PrefetchScalarGridSpec(
            num_scalar_prefetch=0,
            grid=grid,                                  # (N-blocks, batch-blocks)
            in_specs=[param_spec],
            out_specs=pl.BlockSpec((block_batch, block_n, d),
                                   lambda nn, b: (b, nn, 0)),
        ),
        compiler_params=pltpu.CompilerParams(
            dimension_semantics=("parallel", "parallel"),
            vmem_limit_bytes=vmem_limit,
        ),
        cost_estimate=pl.CostEstimate(
            flops=0, transcendentals=0, bytes_accessed=int(bytes_accessed)),
    )(dream_queries)


class DreamEmbeddingJAX:
    """Minimal JAX port of DreamEmbedding (forward only)."""

    initializer_range: float = 0.02

    def __init__(self, num_dream_queries: int = 64, embed_hidden_size: int = 4096,
                 key: jax.Array | None = None, dtype=jnp.float32):
        self.num_dream_queries = num_dream_queries
        self.embed_hidden_size = embed_hidden_size
        if key is None:
            key = jax.random.PRNGKey(0)
        # nn.Parameter init: normal(mean=0, std=initializer_range)
        self.dream_queries = (
            self.initializer_range
            * jax.random.normal(
                key, (1, num_dream_queries, embed_hidden_size), dtype=jnp.float32)
        ).astype(dtype)

    @property
    def embed_len(self):
        return self.num_dream_queries

    @property
    def embed_dim(self):
        return self.embed_hidden_size

    def forward(self, batch_size: int = 1, *, block_batch: int | None = None,
                block_n: int | None = None) -> jax.Array:
        return dream_embedding_forward(self.dream_queries, batch_size,
                                       block_batch=block_batch, block_n=block_n)

    # TODO(synk): save_model/load_model/processor/FSDP plumbing are host-side
    # checkpoint utilities with no Pallas equivalent; intentionally omitted.


if __name__ == "__main__":
    key = jax.random.PRNGKey(0)
    module = DreamEmbeddingJAX(num_dream_queries=64, embed_hidden_size=128, key=key)

    # 1) Default auto-tiled path (>= 2 grid steps for batch > 1).
    batch_size = 2
    out = jax.block_until_ready(module.forward(batch_size=batch_size))
    ref = jnp.broadcast_to(module.dream_queries,
                           (batch_size, module.embed_len, module.embed_dim))
    assert out.shape == (batch_size, 64, 128), out.shape
    assert out.dtype == module.dream_queries.dtype
    assert jnp.array_equal(out, ref), "mismatch vs reference broadcast (batch=2)"

    # 2) Remainder on the batch axis: batch not divisible by block_batch
    #    (boundary block clipped by Pallas on write-back).
    out2 = jax.block_until_ready(module.forward(batch_size=3, block_batch=2))
    ref2 = jnp.broadcast_to(module.dream_queries, (3, 64, 128))
    assert out2.shape == (3, 64, 128), out2.shape
    assert jnp.array_equal(out2, ref2), "mismatch vs reference broadcast (batch=3)"

    # 3) Forced N-tiling path (second grid axis over num_dream_queries).
    out3 = jax.block_until_ready(module.forward(batch_size=4, block_n=32))
    ref3 = jnp.broadcast_to(module.dream_queries, (4, 64, 128))
    assert out3.shape == (4, 64, 128), out3.shape
    assert jnp.array_equal(out3, ref3), "mismatch vs reference broadcast (N-tiled)"

    # 4) bf16 parameter (checks sublane handling for packed dtypes).
    module_bf16 = DreamEmbeddingJAX(num_dream_queries=64, embed_hidden_size=128,
                                    key=key, dtype=jnp.bfloat16)
    out4 = jax.block_until_ready(module_bf16.forward(batch_size=2))
    ref4 = jnp.broadcast_to(module_bf16.dream_queries, (2, 64, 128))
    assert out4.dtype == jnp.bfloat16
    assert jnp.array_equal(out4, ref4), "mismatch vs reference broadcast (bf16)"

    print("KERNEL_OK")
</pallas_src>

<mosaic_0001>
module attributes {stable_mosaic.version = 11 : i64} {
  func.func @_broadcast_batch_kernel(%arg0: i32, %arg1: i32, %arg2: memref<1x64x128xf32, #tpu.memory_space<vmem>>, %arg3: memref<1x64x128xf32, #tpu.memory_space<vmem>>) attributes {dimension_semantics = [#tpu.dimension_semantics<parallel>, #tpu.dimension_semantics<parallel>], iteration_bounds = array<i64: 1, 2>, scalar_prefetch = 0 : i64, scratch_operands = 0 : i64, tpu.core_type = #tpu.core_type<tc>, window_params = [{pipeline_mode = #tpu.pipeline_mode<synchronous>, transform_indices = @transform_0, window_bounds = array<i64: 1, 64, 128>}, {transform_indices = @transform_1, window_bounds = array<i64: 1, 64, 128>}]} {
    %c0 = arith.constant 0 : index
    %c0_0 = arith.constant 0 : index
    %c0_1 = arith.constant 0 : index
    %0 = vector.load %arg2[%c0, %c0_0, %c0_1] : memref<1x64x128xf32, #tpu.memory_space<vmem>>, vector<1x64x128xf32>
    %c0_2 = arith.constant 0 : index
    %c0_3 = arith.constant 0 : index
    %c0_4 = arith.constant 0 : index
    %1 = vector.load %arg3[%c0_2, %c0_3, %c0_4] : memref<1x64x128xf32, #tpu.memory_space<vmem>>, vector<1x64x128xf32>
    tpu.vector_store %arg3[%c0_2, %c0_3, %c0_4], %0 {strides = array<i32>} : memref<1x64x128xf32, #tpu.memory_space<vmem>>, vector<1x64x128xf32>,
    return
  }
  func.func @transform_0(%arg0: i32, %arg1: i32) -> (i32, i32, i32) {
    %c0_i32 = arith.constant 0 : i32
    %c0_i32_0 = arith.constant 0 : i32
    %c0_i32_1 = arith.constant 0 : i32
    return %c0_i32, %arg0, %c0_i32_0 : i32, i32, i32
  }
  func.func @transform_1(%arg0: i32, %arg1: i32) -> (i32, i32, i32) {
    %c0_i32 = arith.constant 0 : i32
    %c0_i32_0 = arith.constant 0 : i32
    return %arg1, %arg0, %c0_i32 : i32, i32, i32
  }
}

</mosaic_0001>

<llo_original>
// kernel: tpu_custom_call.1
$region0: #{tpu_custom_call.1}
  #allocation0 [shape = 'u32[]', space=smem, size = 0x4, offset = 0x4, fixed_abs, tag = 'smem constant byte address 0x4 - core index']
  #allocation1 [shape = 'u32[72,128]{1,0:T(1,128)}', space=vmem, size = 0x9000, scoped, tag = 'internal scratch']
  %s0 = inlined_call_operand.hbm [shape: f32[1,64,128], index: 0, kind: input, shape index: {}]
  %s1 = inlined_call_operand.hbm [shape: f32[2,64,128], index: 1, kind: output, shape index: {}]
  %s2 = sld [smem:[#allocation0]]
  $region41: #{tpu_custom_call.1} parent=0
    _
  %s4 = ssub.s32 1, %s2
  %s5 = scalar_select 0, %s4, %s2
  $region1: #{tpu_custom_call.1} parent=0
    #allocation2 [shape = 'u8[32768]{0}', space=vmem, size = 0x8000, scoped, tag = 'input window, operand 0, single buffered']
    #allocation3 [shape = 's32[2]{0}', space=sflag, size = 0x8, scoped, tag = 'scoped memory for tpu_custom_call.1']
    #allocation4 [shape = 's32[2]{0}', space=sflag, size = 0x8, scoped, tag = 'scoped memory for tpu_custom_call.1']
    #allocation5 [shape = 'u8[65536]{0}', space=vmem, size = 0x10000, scoped, tag = 'output window, operand 0']
    %6 = vsyncpa [#allocation3], 0
    %7 = vsyncpa [#allocation4], 0
    %s8 = scalar_lea.sflag [#allocation4], 1
    %9 = vsyncpa %s8, 0
    loop: start=0, step=1, limit=4
    $region2: #{tpu_custom_call.1} parent=1 // loop_pre_header
      _
    $region3: #{tpu_custom_call.1} parent=1 // loop_header
      %s11 = sphi 0, %s15
      %p12 = scmp.ge.s32.totalorder %s11, 4
      %s18 = sphi 0, %s30
      %s19 = sphi 0, %s26
      %s20 = sphi 0, %s18
      %s21 = sphi 0, %s19
      %s22 = sphi 0, %s20
      %s23 = sphi 0, %s21
      %s33 = sphi 0, %s35
      %s36 = sphi 0, %s33
      %s37 = sphi 0, %s36
      %s53 = sphi 0, %s37
      %s61 = sphi 0, %s63
      %s64 = sphi 0, %s61
      %s65 = sphi 0, %s64
      %s81 = sphi 0, %s65
    $region4: #{tpu_custom_call.1} parent=1 // loop_header_branch
      %14 = sbr.rel (%p12) target = $region8
    $region5: #{tpu_custom_call.1} parent=1 // loop_body
      %s16 = ssub.s32 %s11, 1
      %s17 = ssub.s32 %s11, 2
      %s24 = sadd.s32 1, %s19
      %p25 = scmp.ge.s32.totalorder %s24, 2
      %s26 = scalar_select %p25, 0, %s24
      %s27 = sadd.s32 1, %s18
      %s28 = scalar_select %p25, %s27, %s18
      %p29 = scmp.ge.s32.totalorder %s28, 1
      %s30 = scalar_select %p29, 0, %s28
      %s31 = ssub.s32 %s18, %s30
      %p32 = scmp.eq.s32.totalorder %s31, 0
      %s34 = sadd.s32 %s33, 1
      %s35 = scalar_select %p32, %s33, %s34
      %p38 = pneg %p32
      %p39 = scmp.eq.s32.totalorder %s11, 1
      %p40 = por %p38, %p39
      %p41 = scmp.ne.s32.totalorder %s33, %s36
      %p42 = scmp.eq.s32.totalorder %s11, 0
      %p43 = por %p41, %p42
      %p44 = scmp.ne.s32.totalorder %s33, %s36
      %p45 = scmp.eq.s32.totalorder %s16, 1
      %p46 = por %p44, %p45
      %p47 = scmp.ne.s32.totalorder %s36, %s37
      %p48 = scmp.eq.s32.totalorder %s16, 0
      %p49 = por %p47, %p48
      %p50 = scmp.ne.s32.totalorder %s36, %s37
      %p51 = scmp.eq.s32.totalorder %s17, 1
      %p52 = por %p50, %p51
      %p54 = scmp.ne.s32.totalorder %s37, %s53
      %p55 = scmp.eq.s32.totalorder %s17, 0
      %p56 = por %p54, %p55
      %s57 = ssub.s32 %s19, %s26
      %s58 = ssub.s32 %s18, %s30
      %s59 = sor.u32 %s57, %s58
      %p60 = scmp.eq.s32.totalorder %s59, 0
      %s62 = sadd.s32 %s61, 1
      %s63 = scalar_select %p60, %s61, %s62
      %p66 = pneg %p60
      %p67 = scmp.eq.s32.totalorder %s11, 1
      %p68 = por %p66, %p67
      %p69 = scmp.ne.s32.totalorder %s61, %s64
      %p70 = scmp.eq.s32.totalorder %s11, 0
      %p71 = por %p69, %p70
      %p72 = scmp.ne.s32.totalorder %s61, %s64
      %p73 = scmp.eq.s32.totalorder %s16, 1
      %p74 = por %p72, %p73
      %p75 = scmp.ne.s32.totalorder %s64, %s65
      %p76 = scmp.eq.s32.totalorder %s16, 0
      %p77 = por %p75, %p76
      %p78 = scmp.ne.s32.totalorder %s64, %s65
      %p79 = scmp.eq.s32.totalorder %s17, 1
      %p80 = por %p78, %p79
      %p82 = scmp.ne.s32.totalorder %s65, %s81
      %p83 = scmp.eq.s32.totalorder %s17, 0
      %p84 = por %p82, %p83
      %p85 = scmp.le.s32.totalorder 1, %s11
      %p86 = scmp.lt.s32.totalorder %s11, 3
      %p87 = pnand %p85, %p86
      %p88 = pneg %p87
      // Predicated region
      $region9: #{tpu_custom_call.1} parent=5 // pred_check
        _
      $region10: #{tpu_custom_call.1} parent=5 // pred_check_branch
        %90 = sbr.rel (%p87) target = $region12
      $region11: #{tpu_custom_call.1} parent=5 // pred_region
        %s91 = ssub.s32 %s11, 1
        // Predicated region
        $region13: #{tpu_custom_call.1} parent=11 // pred_check
          %p92 = pneg %p49
        $region14: #{tpu_custom_call.1} parent=11 // pred_check_branch
          %94 = sbr.rel (%p92) target = $region16
        $region15: #{tpu_custom_call.1} parent=11 // pred_region
          %s95 = smul.u32 8, %s20
          %97 = vsyncadd [#allocation3], 0
          %s98 = smul.addr %s95, 8
          %s99 = scalar_lea.hbm %s0, %s98
          %s100 = sshll.u32 %s99, 4
          %s101 = int_to_ptr.hbm [resolvable:$true] %s100
          %s102 = sshll.u32 [#allocation2], 4
          %s103 = int_to_ptr.vmem [resolvable:$true] %s102
          %108 = dma.hbm_to_vmem [thread:$0]  %s101, 1024, %s103, [#allocation3], 128, 128, 8
        $region16: #{tpu_custom_call.1} parent=11 // pred_fallthru
          _
      $region12: #{tpu_custom_call.1} parent=5 // pred_fallthru
        _
      %p109 = scmp.lt.s32.totalorder %s11, 2
      // Predicated region
      $region17: #{tpu_custom_call.1} parent=5 // pred_check
        %p110 = pneg %p109
      $region18: #{tpu_custom_call.1} parent=5 // pred_check_branch
        %112 = sbr.rel (%p110) target = $region20
      $region19: #{tpu_custom_call.1} parent=5 // pred_region
        _
      $region20: #{tpu_custom_call.1} parent=5 // pred_fallthru
        _
      %p113 = scmp.le.s32.totalorder 1, %s11
      %p114 = scmp.lt.s32.totalorder %s11, 3
      %p115 = pnand %p113, %p114
      %p116 = pneg %p115
      // Predicated region
      $region21: #{tpu_custom_call.1} parent=5 // pred_check
        _
      $region22: #{tpu_custom_call.1} parent=5 // pred_check_branch
        %118 = sbr.rel (%p115) target = $region24
      $region23: #{tpu_custom_call.1} parent=5 // pred_region
        %s119 = ssub.s32 %s11, 1
        // Predicated region
        $region25: #{tpu_custom_call.1} parent=23 // pred_check
          %p120 = pneg %p49
        $region26: #{tpu_custom_call.1} parent=23 // pred_check_branch
          %122 = sbr.rel (%p120) target = $region28
        $region27: #{tpu_custom_call.1} parent=23 // pred_region
          %124 = dma.done [#allocation3], 1024
        $region28: #{tpu_custom_call.1} parent=23 // pred_fallthru
          _
        %p125 = pneg %p49
        %p126 = pneg %p46
        %p127 = pneg %p77
        %p128 = pneg %p74
        %s129 = sand.u32 %s64, 1
        %s130 = scalar_lea.sflag [#allocation4], %s129
        %s131 = sand.u32 %s64, 1
        %s132 = smul.addr %s131, 64
        %s133 = scalar_lea.vmem [#allocation5], %s132
        %s134 = smul.u32 8, %s20
        %s135 = smul.u32 8, %s20
        %v136 = vld [vmem:[#allocation2] sm:$0xff]
        %v137 = vld [vmem:[#allocation2 + $0x8] sm:$0xff]
        %v138 = vld [vmem:[#allocation2 + $0x10] sm:$0xff]
        %v139 = vld [vmem:[#allocation2 + $0x18] sm:$0xff]
        %v140 = vld [vmem:[#allocation2 + $0x20] sm:$0xff]
        %v141 = vld [vmem:[#allocation2 + $0x28] sm:$0xff]
        %v142 = vld [vmem:[#allocation2 + $0x30] sm:$0xff]
        %v143 = vld [vmem:[#allocation2 + $0x38] sm:$0xff]
        %144 = vst [vmem:[%s133] sm:$0xff] %v136
        %145 = vst [vmem:[%s133 + $0x8] sm:$0xff] %v137
        %146 = vst [vmem:[%s133 + $0x10] sm:$0xff] %v138
        %147 = vst [vmem:[%s133 + $0x18] sm:$0xff] %v139
        %148 = vst [vmem:[%s133 + $0x20] sm:$0xff] %v140
        %149 = vst [vmem:[%s133 + $0x28] sm:$0xff] %v141
        %150 = vst [vmem:[%s133 + $0x30] sm:$0xff] %v142
        %151 = vst [vmem:[%s133 + $0x38] sm:$0xff] %v143
        %s152 = sand.u32 %s64, 1
        %s153 = scalar_lea.sflag [#allocation4], %s152
        %s154 = sand.u32 %s64, 1
        %s155 = smul.addr %s154, 64
        %s156 = scalar_lea.vmem [#allocation5], %s155
        // Predicated region
        $region29: #{tpu_custom_call.1} parent=23 // pred_check
          %p157 = pneg %p74
        $region30: #{tpu_custom_call.1} parent=23 // pred_check_branch
          %159 = sbr.rel (%p157) target = $region32
        $region31: #{tpu_custom_call.1} parent=23 // pred_region
          %s160 = smul.u32 8, %s20
          %162 = vsyncadd %s153, 0
          %s163 = smul.addr %s21, 8
          %s164 = sadd.s32 %s160, %s163
          %s165 = smul.addr %s164, 8
          %s166 = scalar_lea.hbm %s1, %s165
          %s167 = sshll.u32 %s156, 4
          %s168 = int_to_ptr.vmem [resolvable:$true] %s167
          %s169 = sshll.u32 %s166, 4
          %s170 = int_to_ptr.hbm [resolvable:$true] %s169
          %175 = dma.vmem_to_hbm [thread:$0]  %s168, 1024, %s170, %s153, 128, 128, 8
        $region32: #{tpu_custom_call.1} parent=23 // pred_fallthru
          _
      $region24: #{tpu_custom_call.1} parent=5 // pred_fallthru
        _
      %p176 = scmp.le.s32.totalorder 2, %s11
      // Predicated region
      $region33: #{tpu_custom_call.1} parent=5 // pred_check
        %p177 = pneg %p176
      $region34: #{tpu_custom_call.1} parent=5 // pred_check_branch
        %179 = sbr.rel (%p177) target = $region36
      $region35: #{tpu_custom_call.1} parent=5 // pred_region
        %s180 = ssub.s32 %s11, 2
        // Predicated region
        $region37: #{tpu_custom_call.1} parent=35 // pred_check
          %p181 = pneg %p80
        $region38: #{tpu_custom_call.1} parent=35 // pred_check_branch
          %183 = sbr.rel (%p181) target = $region40
        $region39: #{tpu_custom_call.1} parent=35 // pred_region
          %s184 = sand.u32 %s65, 1
          %s185 = scalar_lea.sflag [#allocation4], %s184
          %s186 = sand.u32 %s65, 1
          %s187 = smul.addr %s186, 64
          %s188 = scalar_lea.vmem [#allocation5], %s187
          %190 = dma.done %s185, 1024
        $region40: #{tpu_custom_call.1} parent=35 // pred_fallthru
          _
      $region36: #{tpu_custom_call.1} parent=5 // pred_fallthru
        _
    $region6: #{tpu_custom_call.1} parent=1 // loop_footer
      %s15 = sadd.s32 1, %s11
    $region7: #{tpu_custom_call.1} parent=1 // loop_footer_branch
      %10 = sbr.rel target = $region3
    $region8: #{tpu_custom_call.1} parent=1 // loop_exit
      _
    %191 = vsyncpa [#allocation3], 1
    %s192 = scalar_lea.sflag [#allocation3], 1
    %193 = vsyncpa %s192, 1
    %194 = vsyncpa [#allocation4], 1
    %s195 = scalar_lea.sflag [#allocation4], 1
    %196 = vsyncpa %s195, 1

</llo_original>
